<compile_context>
chip_gen: v7x
topology: tpu7x:2x2x1
jax: 0.10.0
libtpu: 0.0.40
codegen_flags: <defaults>
</compile_context>

<pallas_src>
import functools

import jax
import jax.numpy as jnp
from jax.experimental import pallas as pl
from jax.experimental.pallas import tpu as pltpu


def _round_up(v, m):
    return (v + m - 1) // m * m


# ------------------------------- kernel -----------------------------------

def bottleneck_kernel(x_ref, mask_ref, w1_ref, w2_ref, w3_ref, bias_ref,
                      o_ref, stacked_ref, *, H, W, P, mm_dtype):
    L = x_ref.shape[1]                      # fused-lane extent of this block
    x = x_ref[...]                          # (Cin, L) f32 -- also the residual

    # ---- conv1 (1x1, BN scale folded) + bias + relu ----------------------
    h1 = jnp.dot(w1_ref[...], x.astype(mm_dtype),
                 preferred_element_type=jnp.float32)
    h1 = jnp.maximum(h1 + bias_ref[0:P, :], 0.0)        # (P, L) f32

    # ---- conv2 (3x3, stride 1, pad 1): roll + mask im2col into scratch ---
    Kpad = stacked_ref.shape[0]
    if Kpad > 9 * P:                         # zero the sublane-pad rows once
        stacked_ref[pl.ds(9 * P, Kpad - 9 * P), :] = jnp.zeros(
            (Kpad - 9 * P, L), mm_dtype)

    k = 0
    for ky in range(3):
        for kx in range(3):
            dy, dx = ky - 1, kx - 1
            if dy == 0 and dx == 0:
                tap = h1                     # center tap is always valid
            else:
                # shifted[f] = h1[f + dy*W + dx]; per-image validity mask
                # (precomputed host-side) kills wrap-around / cross-image taps.
                shift = (-(dy * W + dx)) % L
                tap = pltpu.roll(h1, shift, axis=1) * mask_ref[k:k + 1, :]
            stacked_ref[pl.ds(k * P, P), :] = tap.astype(mm_dtype)
            k += 1

    h2 = jnp.dot(w2_ref[...], stacked_ref[...],
                 preferred_element_type=jnp.float32)
    h2 = jnp.maximum(h2 + bias_ref[P:2 * P, :], 0.0)    # (P, L) f32

    # ---- conv3 (1x1, BN scale folded) + bias + residual + relu -----------
    h3 = jnp.dot(w3_ref[...], h2.astype(mm_dtype),
                 preferred_element_type=jnp.float32)
    h3 = h3 + bias_ref[2 * P:6 * P, :]                   # (Cout, L)
    o_ref[...] = jnp.maximum(h3 + x, 0.0)


# ------------------------------- wrapper -----------------------------------

def bottleneck_pallas(x_nchw, fp, *, num_lane_tiles=1, mm_dtype=jnp.bfloat16):
    """x_nchw: (N, Cin, H, W) f32.  fp: folded params (BN scale in weights).

    num_lane_tiles: 1 on v5e/v6e (single TensorCore, one big lane-dense step);
    2 on v7x so each TensorCore processes half of the fused lane extent.
    """
    N, Cin, H, W = x_nchw.shape
    HW = H * W
    L = N * HW
    P = fp["w1"].shape[0]
    Cout = fp["w3"].shape[0]
    Kpad = fp["w2"].shape[1]
    assert Cout == Cin, "residual add (downsample=None) needs inplanes == planes*4"
    assert L % num_lane_tiles == 0
    L_tile = L // num_lane_tiles
    assert L_tile % HW == 0, "lane tiles must align to image boundaries"
    assert L_tile % 128 == 0, "lane tiles must stay lane-dense"

    # Channel-major with batch fused into the lane axis: (Cin, N*HW).
    x_fused = jnp.transpose(x_nchw.reshape(N, Cin, HW), (1, 0, 2)).reshape(Cin, L)

    # Per-image 3x3 tap validity masks, computed once host-side: (9, N*HW).
    idx = jnp.arange(HW)
    row, col = idx // W, idx % W
    masks = []
    for ky in range(3):
        for kx in range(3):
            dy, dx = ky - 1, kx - 1
            masks.append((row + dy >= 0) & (row + dy < H) &
                         (col + dx >= 0) & (col + dx < W))
    mask = jnp.tile(jnp.stack(masks).astype(jnp.float32), (1, N))   # (9, L)

    # Pre-cast folded weights to the MXU operand dtype.
    w1 = fp["w1"].astype(mm_dtype)
    w2 = fp["w2"].astype(mm_dtype)
    w3 = fp["w3"].astype(mm_dtype)
    bias = fp["bias"]                                               # (6P, 1) f32

    kernel = functools.partial(bottleneck_kernel, H=H, W=W, P=P, mm_dtype=mm_dtype)

    def full_spec(arr):
        nd = arr.ndim
        return pl.BlockSpec(arr.shape, lambda t, _nd=nd: (0,) * _nd)

    out = pl.pallas_call(
        kernel,
        out_shape=jax.ShapeDtypeStruct((Cout, L), jnp.float32),
        grid_spec=pltpu.PrefetchScalarGridSpec(
            num_scalar_prefetch=0,
            grid=(num_lane_tiles,),
            in_specs=[
                pl.BlockSpec((Cin, L_tile), lambda t: (0, t)),
                pl.BlockSpec((9, L_tile), lambda t: (0, t)),
                full_spec(w1), full_spec(w2), full_spec(w3), full_spec(bias),
            ],
            out_specs=pl.BlockSpec((Cout, L_tile), lambda t: (0, t)),
            scratch_shapes=[pltpu.VMEM((Kpad, L_tile), mm_dtype)],
        ),
        compiler_params=pltpu.CompilerParams(
            dimension_semantics=("parallel",),
            vmem_limit_bytes=32 * 1024 * 1024),
    )(x_fused, mask, w1, w2, w3, bias)

    return jnp.transpose(out.reshape(Cout, N, HW), (1, 0, 2)).reshape(N, Cout, H, W)


# --------------------------- parameter glue --------------------------------

def make_raw_params(key, inplanes, planes):
    """Deterministic synthetic conv weights + BN params (PyTorch layouts)."""
    exp = 4
    ks = jax.random.split(key, 6)

    def bn_params(k, c):
        kg, kb, km, kv = jax.random.split(k, 4)
        gamma = jax.random.normal(kg, (c,)) * 0.5 + 1.0
        beta = jax.random.normal(kb, (c,)) * 0.1
        mean = jax.random.normal(km, (c,)) * 0.1
        var = jnp.abs(jax.random.normal(kv, (c,))) * 0.5 + 0.5
        return (gamma.astype(jnp.float32), beta.astype(jnp.float32),
                mean.astype(jnp.float32), var.astype(jnp.float32))

    w1 = (jax.random.normal(ks[0], (planes, inplanes)) * 0.1).astype(jnp.float32)
    w2 = (jax.random.normal(ks[1], (planes, planes, 3, 3)) * 0.1).astype(jnp.float32)
    w3 = (jax.random.normal(ks[2], (planes * exp, planes)) * 0.1).astype(jnp.float32)
    return dict(w1=w1, w2=w2, w3=w3,
                bn1=bn_params(ks[3], planes),
                bn2=bn_params(ks[4], planes),
                bn3=bn_params(ks[5], planes * exp))


def fold_params(raw, eps=1e-5):
    """Fold eval-mode BN scale into conv weights; pack per-channel biases."""
    def scale_bias(bn):
        g, b, m, v = bn
        s = g / jnp.sqrt(v + eps)
        return s, b - m * s

    s1, b1 = scale_bias(raw["bn1"])
    s2, b2 = scale_bias(raw["bn2"])
    s3, b3 = scale_bias(raw["bn3"])

    P = raw["w2"].shape[0]
    Kpad = _round_up(9 * P, 8)
    w1 = raw["w1"] * s1[:, None]                                     # (P, Cin)
    # im2col weight: column = (ky*3+kx)*P + p_in; zero-pad to Kpad columns.
    w2 = jnp.transpose(raw["w2"], (0, 2, 3, 1)).reshape(P, 9 * P) * s2[:, None]
    w2 = jnp.pad(w2, ((0, 0), (0, Kpad - 9 * P)))                    # (P, Kpad)
    w3 = raw["w3"] * s3[:, None]                                     # (Cout, P)
    bias = jnp.concatenate([b1, b2, b3])[:, None].astype(jnp.float32)  # (6P, 1)
    return dict(w1=w1, w2=w2, w3=w3, bias=bias)


# ------------------------------ reference -----------------------------------

def bottleneck_ref(x, raw, eps=1e-5):
    """Pure-JAX NCHW reference matching the PyTorch module (eval-mode BN)."""
    relu = lambda t: jnp.maximum(t, 0.0)

    def bn(t, p):
        g, b, m, v = p
        s = g / jnp.sqrt(v + eps)
        return t * s[None, :, None, None] + (b - m * s)[None, :, None, None]

    N, Cin, H, W = x.shape
    h = relu(bn(jnp.einsum("nchw,pc->nphw", x, raw["w1"]), raw["bn1"]))
    hp = jnp.pad(h, ((0, 0), (0, 0), (1, 1), (1, 1)))
    acc = jnp.zeros_like(h)
    for ky in range(3):
        for kx in range(3):
            acc = acc + jnp.einsum("nchw,pc->nphw",
                                   hp[:, :, ky:ky + H, kx:kx + W],
                                   raw["w2"][:, :, ky, kx])
    h2 = relu(bn(acc, raw["bn2"]))
    h3 = bn(jnp.einsum("nchw,pc->nphw", h2, raw["w3"]), raw["bn3"])
    return relu(h3 + x)


if __name__ == "__main__":
    # NCHW input [2, 16, 16, 16]; planes=4 -> expansion gives Cout=16=inplanes.
    N, inplanes, planes, H, W = 2, 16, 4, 16, 16
    key = jax.random.PRNGKey(0)
    kx, kp = jax.random.split(key)

    x = jax.random.normal(kx, (N, inplanes, H, W), dtype=jnp.float32)
    raw = make_raw_params(kp, inplanes, planes)
    fp = fold_params(raw)
    ref = bottleneck_ref(x, raw)

    # f32 MXU operands: tight verification against the f32 reference.
    out_f32 = jax.block_until_ready(bottleneck_pallas(x, fp, mm_dtype=jnp.float32))
    assert out_f32.shape == (N, planes * 4, H, W)
    assert jnp.allclose(out_f32, ref, atol=1e-4, rtol=1e-4), "f32 mismatch vs reference"

    # bf16 MXU operands (production path): loosened tolerance vs f32 reference.
    out_bf16 = jax.block_until_ready(bottleneck_pallas(x, fp, mm_dtype=jnp.bfloat16))
    assert out_bf16.shape == (N, planes * 4, H, W)
    assert jnp.allclose(out_bf16, ref, atol=3e-2, rtol=3e-2), "bf16 mismatch vs reference"

    # TODO(synk): BatchNorm training-mode running-stat updates are not
    # implemented (kernel realizes eval-mode BN folded into the weights).
    print("KERNEL_OK")
</pallas_src>

<mosaic_0001>
module attributes {stable_mosaic.version = 11 : i64} {
  func.func @bottleneck_kernel(%arg0: i32, %arg1: memref<16x512xf32, #tpu.memory_space<vmem>>, %arg2: memref<9x512xf32, #tpu.memory_space<vmem>>, %arg3: memref<4x16xf32, #tpu.memory_space<vmem>>, %arg4: memref<4x40xf32, #tpu.memory_space<vmem>>, %arg5: memref<16x4xf32, #tpu.memory_space<vmem>>, %arg6: memref<24x1xf32, #tpu.memory_space<vmem>>, %arg7: memref<16x512xf32, #tpu.memory_space<vmem>>, %arg8: memref<40x512xf32, #tpu.memory_space<vmem>>) attributes {dimension_semantics = [#tpu.dimension_semantics<parallel>], iteration_bounds = array<i64: 1>, scalar_prefetch = 0 : i64, scratch_operands = 1 : i64, tpu.core_type = #tpu.core_type<tc>, window_params = [{transform_indices = @transform_0, window_bounds = array<i64: 16, 512>}, {transform_indices = @transform_1, window_bounds = array<i64: 9, 512>}, {pipeline_mode = #tpu.pipeline_mode<synchronous>, transform_indices = @transform_2, window_bounds = array<i64: 4, 16>}, {pipeline_mode = #tpu.pipeline_mode<synchronous>, transform_indices = @transform_3, window_bounds = array<i64: 4, 40>}, {pipeline_mode = #tpu.pipeline_mode<synchronous>, transform_indices = @transform_4, window_bounds = array<i64: 16, 4>}, {pipeline_mode = #tpu.pipeline_mode<synchronous>, transform_indices = @transform_5, window_bounds = array<i64: 24, 1>}, {transform_indices = @transform_6, window_bounds = array<i64: 16, 512>}]} {
    %c0 = arith.constant 0 : index
    %c0_0 = arith.constant 0 : index
    %0 = vector.load %arg1[%c0, %c0_0] : memref<16x512xf32, #tpu.memory_space<vmem>>, vector<16x512xf32>
    %c0_1 = arith.constant 0 : index
    %c0_2 = arith.constant 0 : index
    %1 = vector.load %arg3[%c0_1, %c0_2] : memref<4x16xf32, #tpu.memory_space<vmem>>, vector<4x16xf32>
    %cst = arith.constant dense<0.000000e+00> : vector<4x512xf32>
    %2 = tpu.matmul %1, %0, %cst {dimension_numbers = #tpu.dot_dimension_numbers<[1], [0], [0], [1], [0, 0, 1, 1], [], []>} : vector<4x16xf32>, vector<16x512xf32>, vector<4x512xf32> -> vector<4x512xf32>
    %c0_3 = arith.constant 0 : index
    %c0_4 = arith.constant 0 : index
    %3 = vector.load %arg6[%c0_3, %c0_4] : memref<24x1xf32, #tpu.memory_space<vmem>>, vector<4x1xf32>
    %4 = vector.broadcast %3 : vector<4x1xf32> to vector<4x512xf32>
    %5 = arith.addf %2, %4 : vector<4x512xf32>
    %cst_5 = arith.constant 0.000000e+00 : f32
    %6 = vector.broadcast %cst_5 : f32 to vector<4x512xf32>
    %7 = arith.maximumf %5, %6 : vector<4x512xf32>
    %cst_6 = arith.constant 0.000000e+00 : f32
    %8 = vector.broadcast %cst_6 : f32 to vector<4x512xf32>
    %c36 = arith.constant 36 : index
    %c0_7 = arith.constant 0 : index
    %9 = vector.load %arg8[%c36, %c0_7] : memref<40x512xf32, #tpu.memory_space<vmem>>, vector<4x512xf32>
    tpu.vector_store %arg8[%c36, %c0_7], %8 {strides = array<i32>} : memref<40x512xf32, #tpu.memory_space<vmem>>, vector<4x512xf32>,
    %c17_i32 = arith.constant 17 : i32
    %10 = tpu.dynamic_rotate %7 by %c17_i32 dim 1 : vector<4x512xf32>, i32 -> vector<4x512xf32>
    %c0_8 = arith.constant 0 : index
    %c0_9 = arith.constant 0 : index
    %11 = vector.load %arg2[%c0_8, %c0_9] : memref<9x512xf32, #tpu.memory_space<vmem>>, vector<1x512xf32>
    %12 = vector.broadcast %11 : vector<1x512xf32> to vector<4x512xf32>
    %13 = arith.mulf %10, %12 : vector<4x512xf32>
    %c0_10 = arith.constant 0 : index
    %c0_11 = arith.constant 0 : index
    %14 = vector.load %arg8[%c0_10, %c0_11] : memref<40x512xf32, #tpu.memory_space<vmem>>, vector<4x512xf32>
    tpu.vector_store %arg8[%c0_10, %c0_11], %13 {strides = array<i32>} : memref<40x512xf32, #tpu.memory_space<vmem>>, vector<4x512xf32>,
    %c16_i32 = arith.constant 16 : i32
    %15 = tpu.dynamic_rotate %7 by %c16_i32 dim 1 : vector<4x512xf32>, i32 -> vector<4x512xf32>
    %c1 = arith.constant 1 : index
    %c0_12 = arith.constant 0 : index
    %16 = vector.load %arg2[%c1, %c0_12] : memref<9x512xf32, #tpu.memory_space<vmem>>, vector<1x512xf32>
    %17 = vector.broadcast %16 : vector<1x512xf32> to vector<4x512xf32>
    %18 = arith.mulf %15, %17 : vector<4x512xf32>
    %c4 = arith.constant 4 : index
    %c0_13 = arith.constant 0 : index
    %19 = vector.load %arg8[%c4, %c0_13] : memref<40x512xf32, #tpu.memory_space<vmem>>, vector<4x512xf32>
    tpu.vector_store %arg8[%c4, %c0_13], %18 {strides = array<i32>} : memref<40x512xf32, #tpu.memory_space<vmem>>, vector<4x512xf32>,
    %c15_i32 = arith.constant 15 : i32
    %20 = tpu.dynamic_rotate %7 by %c15_i32 dim 1 : vector<4x512xf32>, i32 -> vector<4x512xf32>
    %c2 = arith.constant 2 : index
    %c0_14 = arith.constant 0 : index
    %21 = vector.load %arg2[%c2, %c0_14] : memref<9x512xf32, #tpu.memory_space<vmem>>, vector<1x512xf32>
    %22 = vector.broadcast %21 : vector<1x512xf32> to vector<4x512xf32>
    %23 = arith.mulf %20, %22 : vector<4x512xf32>
    %c8 = arith.constant 8 : index
    %c0_15 = arith.constant 0 : index
    %24 = vector.load %arg8[%c8, %c0_15] : memref<40x512xf32, #tpu.memory_space<vmem>>, vector<4x512xf32>
    tpu.vector_store %arg8[%c8, %c0_15], %23 {strides = array<i32>} : memref<40x512xf32, #tpu.memory_space<vmem>>, vector<4x512xf32>,
    %c1_i32 = arith.constant 1 : i32
    %25 = tpu.dynamic_rotate %7 by %c1_i32 dim 1 : vector<4x512xf32>, i32 -> vector<4x512xf32>
    %c3 = arith.constant 3 : index
    %c0_16 = arith.constant 0 : index
    %26 = vector.load %arg2[%c3, %c0_16] : memref<9x512xf32, #tpu.memory_space<vmem>>, vector<1x512xf32>
    %27 = vector.broadcast %26 : vector<1x512xf32> to vector<4x512xf32>
    %28 = arith.mulf %25, %27 : vector<4x512xf32>
    %c12 = arith.constant 12 : index
    %c0_17 = arith.constant 0 : index
    %29 = vector.load %arg8[%c12, %c0_17] : memref<40x512xf32, #tpu.memory_space<vmem>>, vector<4x512xf32>
    tpu.vector_store %arg8[%c12, %c0_17], %28 {strides = array<i32>} : memref<40x512xf32, #tpu.memory_space<vmem>>, vector<4x512xf32>,
    %c16 = arith.constant 16 : index
    %c0_18 = arith.constant 0 : index
    %30 = vector.load %arg8[%c16, %c0_18] : memref<40x512xf32, #tpu.memory_space<vmem>>, vector<4x512xf32>
    tpu.vector_store %arg8[%c16, %c0_18], %7 {strides = array<i32>} : memref<40x512xf32, #tpu.memory_space<vmem>>, vector<4x512xf32>,
    %c511_i32 = arith.constant 511 : i32
    %31 = tpu.dynamic_rotate %7 by %c511_i32 dim 1 : vector<4x512xf32>, i32 -> vector<4x512xf32>
    %c5 = arith.constant 5 : index
    %c0_19 = arith.constant 0 : index
    %32 = vector.load %arg2[%c5, %c0_19] : memref<9x512xf32, #tpu.memory_space<vmem>>, vector<1x512xf32>
    %33 = vector.broadcast %32 : vector<1x512xf32> to vector<4x512xf32>
    %34 = arith.mulf %31, %33 : vector<4x512xf32>
    %c20 = arith.constant 20 : index
    %c0_20 = arith.constant 0 : index
    %35 = vector.load %arg8[%c20, %c0_20] : memref<40x512xf32, #tpu.memory_space<vmem>>, vector<4x512xf32>
    tpu.vector_store %arg8[%c20, %c0_20], %34 {strides = array<i32>} : memref<40x512xf32, #tpu.memory_space<vmem>>, vector<4x512xf32>,
    %c497_i32 = arith.constant 497 : i32
    %36 = tpu.dynamic_rotate %7 by %c497_i32 dim 1 : vector<4x512xf32>, i32 -> vector<4x512xf32>
    %c6 = arith.constant 6 : index
    %c0_21 = arith.constant 0 : index
    %37 = vector.load %arg2[%c6, %c0_21] : memref<9x512xf32, #tpu.memory_space<vmem>>, vector<1x512xf32>
    %38 = vector.broadcast %37 : vector<1x512xf32> to vector<4x512xf32>
    %39 = arith.mulf %36, %38 : vector<4x512xf32>
    %c24 = arith.constant 24 : index
    %c0_22 = arith.constant 0 : index
    %40 = vector.load %arg8[%c24, %c0_22] : memref<40x512xf32, #tpu.memory_space<vmem>>, vector<4x512xf32>
    tpu.vector_store %arg8[%c24, %c0_22], %39 {strides = array<i32>} : memref<40x512xf32, #tpu.memory_space<vmem>>, vector<4x512xf32>,
    %c496_i32 = arith.constant 496 : i32
    %41 = tpu.dynamic_rotate %7 by %c496_i32 dim 1 : vector<4x512xf32>, i32 -> vector<4x512xf32>
    %c7 = arith.constant 7 : index
    %c0_23 = arith.constant 0 : index
    %42 = vector.load %arg2[%c7, %c0_23] : memref<9x512xf32, #tpu.memory_space<vmem>>, vector<1x512xf32>
    %43 = vector.broadcast %42 : vector<1x512xf32> to vector<4x512xf32>
    %44 = arith.mulf %41, %43 : vector<4x512xf32>
    %c28 = arith.constant 28 : index
    %c0_24 = arith.constant 0 : index
    %45 = vector.load %arg8[%c28, %c0_24] : memref<40x512xf32, #tpu.memory_space<vmem>>, vector<4x512xf32>
    tpu.vector_store %arg8[%c28, %c0_24], %44 {strides = array<i32>} : memref<40x512xf32, #tpu.memory_space<vmem>>, vector<4x512xf32>,
    %c495_i32 = arith.constant 495 : i32
    %46 = tpu.dynamic_rotate %7 by %c495_i32 dim 1 : vector<4x512xf32>, i32 -> vector<4x512xf32>
    %c8_25 = arith.constant 8 : index
    %c0_26 = arith.constant 0 : index
    %47 = vector.load %arg2[%c8_25, %c0_26] : memref<9x512xf32, #tpu.memory_space<vmem>>, vector<1x512xf32>
    %48 = vector.broadcast %47 : vector<1x512xf32> to vector<4x512xf32>
    %49 = arith.mulf %46, %48 : vector<4x512xf32>
    %c32 = arith.constant 32 : index
    %c0_27 = arith.constant 0 : index
    %50 = vector.load %arg8[%c32, %c0_27] : memref<40x512xf32, #tpu.memory_space<vmem>>, vector<4x512xf32>
    tpu.vector_store %arg8[%c32, %c0_27], %49 {strides = array<i32>} : memref<40x512xf32, #tpu.memory_space<vmem>>, vector<4x512xf32>,
    %c0_28 = arith.constant 0 : index
    %c0_29 = arith.constant 0 : index
    %51 = vector.load %arg4[%c0_28, %c0_29] : memref<4x40xf32, #tpu.memory_space<vmem>>, vector<4x40xf32>
    %c0_30 = arith.constant 0 : index
    %c0_31 = arith.constant 0 : index
    %52 = vector.load %arg8[%c0_30, %c0_31] : memref<40x512xf32, #tpu.memory_space<vmem>>, vector<40x512xf32>
    %cst_32 = arith.constant dense<0.000000e+00> : vector<4x512xf32>
    %53 = tpu.matmul %51, %52, %cst_32 {dimension_numbers = #tpu.dot_dimension_numbers<[1], [0], [0], [1], [0, 0, 1, 1], [], []>} : vector<4x40xf32>, vector<40x512xf32>, vector<4x512xf32> -> vector<4x512xf32>
    %c4_33 = arith.constant 4 : index
    %c0_34 = arith.constant 0 : index
    %54 = vector.load %arg6[%c4_33, %c0_34] : memref<24x1xf32, #tpu.memory_space<vmem>>, vector<4x1xf32>
    %55 = vector.broadcast %54 : vector<4x1xf32> to vector<4x512xf32>
    %56 = arith.addf %53, %55 : vector<4x512xf32>
    %cst_35 = arith.constant 0.000000e+00 : f32
    %57 = vector.broadcast %cst_35 : f32 to vector<4x512xf32>
    %58 = arith.maximumf %56, %57 : vector<4x512xf32>
    %c0_36 = arith.constant 0 : index
    %c0_37 = arith.constant 0 : index
    %59 = vector.load %arg5[%c0_36, %c0_37] : memref<16x4xf32, #tpu.memory_space<vmem>>, vector<16x4xf32>
    %cst_38 = arith.constant dense<0.000000e+00> : vector<16x512xf32>
    %60 = tpu.matmul %59, %58, %cst_38 {dimension_numbers = #tpu.dot_dimension_numbers<[1], [0], [0], [1], [0, 0, 1, 1], [], []>} : vector<16x4xf32>, vector<4x512xf32>, vector<16x512xf32> -> vector<16x512xf32>
    %c8_39 = arith.constant 8 : index
    %c0_40 = arith.constant 0 : index
    %61 = vector.load %arg6[%c8_39, %c0_40] : memref<24x1xf32, #tpu.memory_space<vmem>>, vector<16x1xf32>
    %62 = vector.broadcast %61 : vector<16x1xf32> to vector<16x512xf32>
    %63 = arith.addf %60, %62 : vector<16x512xf32>
    %64 = arith.addf %63, %0 : vector<16x512xf32>
    %cst_41 = arith.constant 0.000000e+00 : f32
    %65 = vector.broadcast %cst_41 : f32 to vector<16x512xf32>
    %66 = arith.maximumf %64, %65 : vector<16x512xf32>
    %c0_42 = arith.constant 0 : index
    %c0_43 = arith.constant 0 : index
    %67 = vector.load %arg7[%c0_42, %c0_43] : memref<16x512xf32, #tpu.memory_space<vmem>>, vector<16x512xf32>
    tpu.vector_store %arg7[%c0_42, %c0_43], %66 {strides = array<i32>} : memref<16x512xf32, #tpu.memory_space<vmem>>, vector<16x512xf32>,
    return
  }
  func.func @transform_0(%arg0: i32) -> (i32, i32) {
    %c0_i32 = arith.constant 0 : i32
    %c0_i32_0 = arith.constant 0 : i32
    return %c0_i32, %arg0 : i32, i32
  }
  func.func @transform_1(%arg0: i32) -> (i32, i32) {
    %c0_i32 = arith.constant 0 : i32
    %c0_i32_0 = arith.constant 0 : i32
    return %c0_i32, %arg0 : i32, i32
  }
  func.func @transform_2(%arg0: i32) -> (i32, i32) {
    %c0_i32 = arith.constant 0 : i32
    %c0_i32_0 = arith.constant 0 : i32
    %c0_i32_1 = arith.constant 0 : i32
    return %c0_i32, %c0_i32_0 : i32, i32
  }
  func.func @transform_3(%arg0: i32) -> (i32, i32) {
    %c0_i32 = arith.constant 0 : i32
    %c0_i32_0 = arith.constant 0 : i32
    %c0_i32_1 = arith.constant 0 : i32
    return %c0_i32, %c0_i32_0 : i32, i32
  }
  func.func @transform_4(%arg0: i32) -> (i32, i32) {
    %c0_i32 = arith.constant 0 : i32
    %c0_i32_0 = arith.constant 0 : i32
    %c0_i32_1 = arith.constant 0 : i32
    return %c0_i32, %c0_i32_0 : i32, i32
  }
  func.func @transform_5(%arg0: i32) -> (i32, i32) {
    %c0_i32 = arith.constant 0 : i32
    %c0_i32_0 = arith.constant 0 : i32
    %c0_i32_1 = arith.constant 0 : i32
    return %c0_i32, %c0_i32_0 : i32, i32
  }
  func.func @transform_6(%arg0: i32) -> (i32, i32) {
    %c0_i32 = arith.constant 0 : i32
    %c0_i32_0 = arith.constant 0 : i32
    return %c0_i32, %arg0 : i32, i32
  }
}

</mosaic_0001>

<llo_original>
// kernel: tpu_custom_call.1
$region0: #{tpu_custom_call.1}
  #allocation0 [shape = 'u32[]', space=smem, size = 0x4, offset = 0x4, fixed_abs, tag = 'smem constant byte address 0x4 - core index']
  #allocation1 [shape = 'u32[144,128]{1,0:T(1,128)}', space=vmem, size = 0x12000, scoped, tag = 'internal scratch']
  #allocation2 [shape = 'f32[40,512]{1,0:T(8,128)}', space=vmem, size = 0x14000, scoped, tag = 'scratch operand']
  %s0 = inlined_call_operand.hbm [shape: f32[16,512], index: 0, kind: input, shape index: {}]
  %s1 = inlined_call_operand.hbm [shape: f32[9,512], index: 1, kind: input, shape index: {}]
  %s2 = inlined_call_operand.vmem [shape: f32[4,16], index: 2, kind: input, shape index: {}]
  %s3 = inlined_call_operand.vmem [shape: f32[4,40], index: 3, kind: input, shape index: {}]
  %s4 = inlined_call_operand.vmem [shape: f32[16,4], index: 4, kind: input, shape index: {}]
  %s5 = inlined_call_operand.vmem [shape: f32[24,1], index: 5, kind: input, shape index: {}]
  %s6 = inlined_call_operand.hbm [shape: f32[16,512], index: 6, kind: output, shape index: {}]
  %s7 = sld [smem:[#allocation0]]
  $region42: #{tpu_custom_call.1} parent=0
    _
  %s9 = ssub.s32 1, %s7
  %s10 = scalar_select 0, %s9, %s7
  $region1: #{tpu_custom_call.1} parent=0
    #allocation3 [shape = 'u8[32768]{0}', space=vmem, size = 0x8000, scoped, tag = 'input window, operand 0, single buffered']
    #allocation4 [shape = 's32[1]{0}', space=sflag, size = 0x4, scoped, tag = 'scoped memory for tpu_custom_call.1']
    #allocation5 [shape = 's32[1]{0}', space=sflag, size = 0x4, scoped, tag = 'scoped memory for tpu_custom_call.1']
    #allocation6 [shape = 'u8[32768]{0}', space=vmem, size = 0x8000, scoped, tag = 'input window, operand 1, single buffered']
    #allocation7 [shape = 's32[1]{0}', space=sflag, size = 0x4, scoped, tag = 'scoped memory for tpu_custom_call.1']
    #allocation8 [shape = 'u8[32768]{0}', space=vmem, size = 0x8000, scoped, tag = 'output window, operand 0, single buffered']
    %11 = vsyncpa [#allocation4], 0
    %12 = vsyncpa [#allocation7], 0
    %13 = vsyncpa [#allocation5], 0
    // Predicated region
    $region2: #{tpu_custom_call.1} parent=1 // pred_check
      _
    $region3: #{tpu_custom_call.1} parent=1 // pred_check_branch
      %15 = sbr.rel (0) target = $region5
    $region4: #{tpu_custom_call.1} parent=1 // pred_region
      %s17 = ssub.s32 1024, 1024
      %18 = vsyncadd [#allocation4], %s17
      %s19 = sshll.u32 [#allocation3], 4
      %s20 = int_to_ptr.vmem [resolvable:$true] %s19
      %25 = dma.hbm_to_vmem [thread:$0]  %s0, 1024, %s20, [#allocation4], 512, 512, 32
    $region5: #{tpu_custom_call.1} parent=1 // pred_fallthru
      _
    // Predicated region
    $region6: #{tpu_custom_call.1} parent=1 // pred_check
      _
    $region7: #{tpu_custom_call.1} parent=1 // pred_check_branch
      %27 = sbr.rel (0) target = $region9
    $region8: #{tpu_custom_call.1} parent=1 // pred_region
      %s29 = ssub.s32 1024, 1024
      %30 = vsyncadd [#allocation7], %s29
      %s31 = sshll.u32 [#allocation6], 4
      %s32 = int_to_ptr.vmem [resolvable:$true] %s31
      %37 = dma.hbm_to_vmem [thread:$0]  %s1, 1024, %s32, [#allocation7], 512, 512, 32
    $region9: #{tpu_custom_call.1} parent=1 // pred_fallthru
      _
    // Predicated region
    $region10: #{tpu_custom_call.1} parent=1 // pred_check
      _
    $region11: #{tpu_custom_call.1} parent=1 // pred_check_branch
      %39 = sbr.rel (0) target = $region13
    $region12: #{tpu_custom_call.1} parent=1 // pred_region
      _
    $region13: #{tpu_custom_call.1} parent=1 // pred_fallthru
      _
    // Predicated region
    $region14: #{tpu_custom_call.1} parent=1 // pred_check
      _
    $region15: #{tpu_custom_call.1} parent=1 // pred_check_branch
      %41 = sbr.rel (0) target = $region17
    $region16: #{tpu_custom_call.1} parent=1 // pred_region
      _
    $region17: #{tpu_custom_call.1} parent=1 // pred_fallthru
      _
    // Predicated region
    $region18: #{tpu_custom_call.1} parent=1 // pred_check
      _
    $region19: #{tpu_custom_call.1} parent=1 // pred_check_branch
      %43 = sbr.rel (0) target = $region21
    $region20: #{tpu_custom_call.1} parent=1 // pred_region
      _
    $region21: #{tpu_custom_call.1} parent=1 // pred_fallthru
      _
    // Predicated region
    $region22: #{tpu_custom_call.1} parent=1 // pred_check
      _
    $region23: #{tpu_custom_call.1} parent=1 // pred_check_branch
      %45 = sbr.rel (0) target = $region25
    $region24: #{tpu_custom_call.1} parent=1 // pred_region
      _
    $region25: #{tpu_custom_call.1} parent=1 // pred_fallthru
      _
    // Predicated region
    $region26: #{tpu_custom_call.1} parent=1 // pred_check
      _
    $region27: #{tpu_custom_call.1} parent=1 // pred_check_branch
      %47 = sbr.rel (0) target = $region29
    $region28: #{tpu_custom_call.1} parent=1 // pred_region
      %48 = dma.done [#allocation4], 1024
    $region29: #{tpu_custom_call.1} parent=1 // pred_fallthru
      _
    // Predicated region
    $region30: #{tpu_custom_call.1} parent=1 // pred_check
      _
    $region31: #{tpu_custom_call.1} parent=1 // pred_check_branch
      %50 = sbr.rel (0) target = $region33
    $region32: #{tpu_custom_call.1} parent=1 // pred_region
      %51 = dma.done [#allocation7], 1024
    $region33: #{tpu_custom_call.1} parent=1 // pred_fallthru
      _
    %v52 = vld [vmem:[#allocation3] sm:$0xff]
    %v53 = vld [vmem:[#allocation3 + $0x8] sm:$0xff]
    %v54 = vld [vmem:[#allocation3 + $0x10] sm:$0xff]
    %v55 = vld [vmem:[#allocation3 + $0x18] sm:$0xff]
    %v56 = vld [vmem:[#allocation3 + $0x20] sm:$0xff]
    %v57 = vld [vmem:[#allocation3 + $0x28] sm:$0xff]
    %v58 = vld [vmem:[#allocation3 + $0x30] sm:$0xff]
    %v59 = vld [vmem:[#allocation3 + $0x38] sm:$0xff]
    %v60 = vld [vmem:[%s2] sm:$0xf]
    %v61 = vld [vmem:[%s5] sm:$0xf]
    %63 = vset.pattern.permute.xlu0 0
    %64 = vperm.xlu0 %63, %v61
    %v65 = vpop.permute.xlu0 %64
    %vm67 = vcmask 130048
    %v69 = vsel %vm67, %v60, 0
    %71 = vmatprep.subr.mxu0 %v53
    %72 = vmatpush1.msra.mxu0 %v52
    %73 = vmatprep.subr.mxu0 %v57
    %74 = vmatpush1.msra.mxu0 %v56
    %75 = vmatprep.subr.mxu0 0.0
    %76 = vmatpush1.msra.mxu0 0.0
    %77 = vmatprep.subr.mxu0 0.0
    %78 = vmatpush1.msra.mxu0 0.0
    %79 = vmatprep.subr.mxu0 0.0
    %80 = vmatpush1.msra.mxu0 0.0
    %81 = vmatprep.subr.mxu0 0.0
    %82 = vmatpush1.msra.mxu0 0.0
    %83 = vmatprep.subr.mxu0 0.0
    %84 = vmatpush1.msra.mxu0 0.0
    %85 = vmatprep.subr.mxu0 0.0
    %86 = vmatpush1.msra.mxu0 0.0
    %87 = vmatprep.subr.mxu0 0.0
    %88 = vmatpush1.msra.mxu0 0.0
    %89 = vmatprep.subr.mxu0 0.0
    %90 = vmatpush1.msra.mxu0 0.0
    %91 = vmatprep.subr.mxu0 0.0
    %92 = vmatpush1.msra.mxu0 0.0
    %93 = vmatprep.subr.mxu0 0.0
    %94 = vmatpush1.msra.mxu0 0.0
    %95 = vmatprep.subr.mxu0 0.0
    %96 = vmatpush1.msra.mxu0 0.0
    %97 = vmatprep.subr.mxu0 0.0
    %98 = vmatpush1.msra.mxu0 0.0
    %99 = vmatprep.subr.mxu0 0.0
    %100 = vmatpush1.msra.mxu0 0.0
    %101 = vmatprep.subr.mxu0 0.0
    %102 = vmatpush1.msra.mxu0 0.0
    %103 = vmatprep.subr.mxu0 0.0
    %104 = vmatpush1.msra.mxu0 0.0
    %105 = vmatprep.subr.mxu0 0.0
    %106 = vmatpush1.msra.mxu0 0.0
    %107 = vmatprep.subr.mxu0 0.0
    %108 = vmatpush1.msra.mxu0 0.0
    %109 = vmatprep.subr.mxu0 0.0
    %110 = vmatpush1.msra.mxu0 0.0
    %111 = vmatprep.subr.mxu0 0.0
    %112 = vmatpush1.msra.mxu0 0.0
    %113 = vmatprep.subr.mxu0 0.0
    %114 = vmatpush1.msra.mxu0 0.0
    %115 = vmatprep.subr.mxu0 0.0
    %116 = vmatpush1.msra.mxu0 0.0
    %117 = vmatprep.subr.mxu0 0.0
    %118 = vmatpush1.msra.mxu0 0.0
    %119 = vmatprep.subr.mxu0 0.0
    %120 = vmatpush1.msra.mxu0 0.0
    %121 = vmatprep.subr.mxu0 0.0
    %122 = vmatpush1.msra.mxu0 0.0
    %123 = vmatprep.subr.mxu0 0.0
    %124 = vmatpush1.msra.mxu0 0.0
    %125 = vmatprep.subr.mxu0 0.0
    %126 = vmatpush1.msra.mxu0 0.0
    %127 = vmatprep.subr.mxu0 0.0
    %128 = vmatpush1.msra.mxu0 0.0
    %129 = vmatprep.subr.mxu0 0.0
    %130 = vmatpush1.msra.mxu0 0.0
    %131 = vmatprep.subr.mxu0 0.0
    %132 = vmatpush1.msra.mxu0 0.0
    %133 = vmatprep.subr.mxu0 0.0
    %134 = vmatpush1.msra.mxu0 0.0
    %135 = vmatprep.mubr.f32.mxu0 0.0
    %136 = vmatmul.mubr.f32.gmra.mrb[0].mxu0 %v69
    %v137 = vpop.f32.mrb[0].mxu0
    %v138 = vadd.f32 %v65, %v137
    %v139 = vpop.f32.mrb[0].mxu0
    %v140 = vadd.f32 %v65, %v139
    %141 = vdwg.mxu0
    %142 = vmatprep.subr.mxu0 %v55
    %143 = vmatpush1.msra.mxu0 %v54
    %144 = vmatprep.subr.mxu0 %v59
    %145 = vmatpush1.msra.mxu0 %v58
    %146 = vmatprep.subr.mxu0 0.0
    %147 = vmatpush1.msra.mxu0 0.0
    %148 = vmatprep.subr.mxu0 0.0
    %149 = vmatpush1.msra.mxu0 0.0
    %150 = vmatprep.subr.mxu0 0.0
    %151 = vmatpush1.msra.mxu0 0.0
    %152 = vmatprep.subr.mxu0 0.0
    %153 = vmatpush1.msra.mxu0 0.0
    %154 = vmatprep.subr.mxu0 0.0
    %155 = vmatpush1.msra.mxu0 0.0
    %156 = vmatprep.subr.mxu0 0.0
    %157 = vmatpush1.msra.mxu0 0.0
    %158 = vmatprep.subr.mxu0 0.0
    %159 = vmatpush1.msra.mxu0 0.0
    %160 = vmatprep.subr.mxu0 0.0
    %161 = vmatpush1.msra.mxu0 0.0
    %162 = vmatprep.subr.mxu0 0.0
    %163 = vmatpush1.msra.mxu0 0.0
    %164 = vmatprep.subr.mxu0 0.0
    %165 = vmatpush1.msra.mxu0 0.0
    %166 = vmatprep.subr.mxu0 0.0
    %167 = vmatpush1.msra.mxu0 0.0
    %168 = vmatprep.subr.mxu0 0.0
    %169 = vmatpush1.msra.mxu0 0.0
    %170 = vmatprep.subr.mxu0 0.0
    %171 = vmatpush1.msra.mxu0 0.0
    %172 = vmatprep.subr.mxu0 0.0
    %173 = vmatpush1.msra.mxu0 0.0
    %174 = vmatprep.subr.mxu0 0.0
    %175 = vmatpush1.msra.mxu0 0.0
    %176 = vmatprep.subr.mxu0 0.0
    %177 = vmatpush1.msra.mxu0 0.0
    %178 = vmatprep.subr.mxu0 0.0
    %179 = vmatpush1.msra.mxu0 0.0
    %180 = vmatprep.subr.mxu0 0.0
    %181 = vmatpush1.msra.mxu0 0.0
    %182 = vmatprep.subr.mxu0 0.0
    %183 = vmatpush1.msra.mxu0 0.0
    %184 = vmatprep.subr.mxu0 0.0
    %185 = vmatpush1.msra.mxu0 0.0
    %186 = vmatprep.subr.mxu0 0.0
    %187 = vmatpush1.msra.mxu0 0.0
    %188 = vmatprep.subr.mxu0 0.0
    %189 = vmatpush1.msra.mxu0 0.0
    %190 = vmatprep.subr.mxu0 0.0
    %191 = vmatpush1.msra.mxu0 0.0
    %192 = vmatprep.subr.mxu0 0.0
    %193 = vmatpush1.msra.mxu0 0.0
    %194 = vmatprep.subr.mxu0 0.0
    %195 = vmatpush1.msra.mxu0 0.0
    %196 = vmatprep.subr.mxu0 0.0
    %197 = vmatpush1.msra.mxu0 0.0
    %198 = vmatprep.subr.mxu0 0.0
    %199 = vmatpush1.msra.mxu0 0.0
    %200 = vmatprep.subr.mxu0 0.0
    %201 = vmatpush1.msra.mxu0 0.0
    %202 = vmatprep.subr.mxu0 0.0
    %203 = vmatpush1.msra.mxu0 0.0
    %204 = vmatprep.subr.mxu0 0.0
    %205 = vmatpush1.msra.mxu0 0.0
    %206 = vmatprep.mubr.f32.mxu0 0.0
    %207 = vmatmul.mubr.f32.gmra.mrb[0].mxu0 %v69
    %v208 = vpop.f32.mrb[0].mxu0
    %v209 = vadd.f32 %v65, %v208
    %v210 = vpop.f32.mrb[0].mxu0
    %v211 = vadd.f32 %v65, %v210
    %212 = vdwg.mxu0
    %v213 = vmax.f32 %v138, 0.0
    %v214 = vmax.f32 %v140, 0.0
    %v215 = vmax.f32 %v209, 0.0
    %v216 = vmax.f32 %v211, 0.0
    %217 = vst [vmem:[#allocation2 + $0x80] sm:$0xf0] 0.0
    %218 = vst [vmem:[#allocation2 + $0x88] sm:$0xf0] 0.0
    %219 = vst [vmem:[#allocation2 + $0x90] sm:$0xf0] 0.0
    %220 = vst [vmem:[#allocation2 + $0x98] sm:$0xf0] 0.0
    %221 = vrot.lane.b32.xlu0 %v213, 17
    %v222 = vpop.permute.xlu0 %221
    %223 = vrot.lane.b32.xlu0 %v214, 17
    %v224 = vpop.permute.xlu0 %223
    %225 = vrot.lane.b32.xlu0 %v215, 17
    %v226 = vpop.permute.xlu0 %225
    %227 = vrot.lane.b32.xlu0 %v216, 17
    %v228 = vpop.permute.xlu0 %227
    %v229 = vlaneseq
    %v230 = vand.u32 %v229, 127
    %vm231 = vcmp.lt.s32.totalorder %v230, 17
    %v232 = vsel %vm231, %v226, %v228
    %v233 = vsel %vm231, %v224, %v226
    %v234 = vsel %vm231, %v222, %v224
    %v235 = vsel %vm231, %v228, %v222
    %v236 = vld [vmem:[#allocation6] ss:$8 sm:$0xf]
    %v238 = vlaneseq
    %v239 = vshrl.u32 %v238, 7
    %v240 = vsub.s32 0, %v239
    %v241 = vrot.slane %v236, %v240
    %v242 = vlaneseq
    %v243 = vshrl.u32 %v242, 7
    %v244 = vsub.s32 1, %v243
    %v245 = vrot.slane %v236, %v244
    %v246 = vlaneseq
    %v247 = vshrl.u32 %v246, 7
    %v248 = vsub.s32 2, %v247
    %v249 = vrot.slane %v236, %v248
    %v250 = vlaneseq
    %v251 = vshrl.u32 %v250, 7
    %v252 = vsub.s32 3, %v251
    %v253 = vrot.slane %v236, %v252
    %v258 = vmul.f32 %v235, %v241
    %v259 = vmul.f32 %v234, %v245
    %v260 = vmul.f32 %v233, %v249
    %v261 = vmul.f32 %v232, %v253
    %262 = vst [vmem:[#allocation2] sm:$0xf] %v258
    %263 = vst [vmem:[#allocation2 + $0x8] sm:$0xf] %v259
    %264 = vst [vmem:[#allocation2 + $0x10] sm:$0xf] %v260
    %265 = vst [vmem:[#allocation2 + $0x18] sm:$0xf] %v261
    %266 = vrot.lane.b32.xlu0 %v213, 16
    %v267 = vpop.permute.xlu0 %266
    %268 = vrot.lane.b32.xlu0 %v214, 16
    %v269 = vpop.permute.xlu0 %268
    %270 = vrot.lane.b32.xlu0 %v215, 16
    %v271 = vpop.permute.xlu0 %270
    %272 = vrot.lane.b32.xlu0 %v216, 16
    %v273 = vpop.permute.xlu0 %272
    %vm274 = vcmp.lt.s32.totalorder %v230, 16
    %v275 = vsel %vm274, %v271, %v273
    %v276 = vsel %vm274, %v269, %v271
    %v277 = vsel %vm274, %v267, %v269
    %v278 = vsel %vm274, %v273, %v267
    %s279 = scalar_lea.vmem [#allocation6], 1
    %v280 = vld [vmem:[%s279] ss:$8 sm:$0xf]
    %v282 = vlaneseq
    %v283 = vshrl.u32 %v282, 7
    %v284 = vsub.s32 0, %v283
    %v285 = vrot.slane %v280, %v284
    %v286 = vlaneseq
    %v287 = vshrl.u32 %v286, 7
    %v288 = vsub.s32 1, %v287
    %v289 = vrot.slane %v280, %v288
    %v290 = vlaneseq
    %v291 = vshrl.u32 %v290, 7
    %v292 = vsub.s32 2, %v291
    %v293 = vrot.slane %v280, %v292
    %v294 = vlaneseq
    %v295 = vshrl.u32 %v294, 7
    %v296 = vsub.s32 3, %v295
    %v297 = vrot.slane %v280, %v296
    %v302 = vmul.f32 %v278, %v285
    %v303 = vmul.f32 %v277, %v289
    %v304 = vmul.f32 %v276, %v293
    %v305 = vmul.f32 %v275, %v297
    %v310 = vrot.slane %v302, 4
    %v311 = vrot.slane %v303, 4
    %v312 = vrot.slane %v304, 4
    %v313 = vrot.slane %v305, 4
    %318 = vst [vmem:[#allocation2] sm:$0xf0] %v310
    %319 = vst [vmem:[#allocation2 + $0x8] sm:$0xf0] %v311
    %320 = vst [vmem:[#allocation2 + $0x10] sm:$0xf0] %v312
    %321 = vst [vmem:[#allocation2 + $0x18] sm:$0xf0] %v313
    %322 = vrot.lane.b32.xlu0 %v213, 15
    %v323 = vpop.permute.xlu0 %322
    %324 = vrot.lane.b32.xlu0 %v214, 15
    %v325 = vpop.permute.xlu0 %324
    %326 = vrot.lane.b32.xlu0 %v215, 15
    %v327 = vpop.permute.xlu0 %326
    %328 = vrot.lane.b32.xlu0 %v216, 15
    %v329 = vpop.permute.xlu0 %328
    %vm330 = vcmp.lt.s32.totalorder %v230, 15
    %v331 = vsel %vm330, %v327, %v329
    %v332 = vsel %vm330, %v325, %v327
    %v333 = vsel %vm330, %v323, %v325
    %v334 = vsel %vm330, %v329, %v323
    %s335 = scalar_lea.vmem [#allocation6], 2
    %v336 = vld [vmem:[%s335] ss:$8 sm:$0xf]
    %v338 = vlaneseq
    %v339 = vshrl.u32 %v338, 7
    %v340 = vsub.s32 0, %v339
    %v341 = vrot.slane %v336, %v340
    %v342 = vlaneseq
    %v343 = vshrl.u32 %v342, 7
    %v344 = vsub.s32 1, %v343
    %v345 = vrot.slane %v336, %v344
    %v346 = vlaneseq
    %v347 = vshrl.u32 %v346, 7
    %v348 = vsub.s32 2, %v347
    %v349 = vrot.slane %v336, %v348
    %v350 = vlaneseq
    %v351 = vshrl.u32 %v350, 7
    %v352 = vsub.s32 3, %v351
    %v353 = vrot.slane %v336, %v352
    %v358 = vmul.f32 %v334, %v341
    %v359 = vmul.f32 %v333, %v345
    %v360 = vmul.f32 %v332, %v349
    %v361 = vmul.f32 %v331, %v353
    %362 = vst [vmem:[#allocation2 + $0x20] sm:$0xf] %v358
    %363 = vst [vmem:[#allocation2 + $0x28] sm:$0xf] %v359
    %364 = vst [vmem:[#allocation2 + $0x30] sm:$0xf] %v360
    %365 = vst [vmem:[#allocation2 + $0x38] sm:$0xf] %v361
    %366 = vrot.lane.b32.xlu0 %v213, 1
    %v367 = vpop.permute.xlu0 %366
    %368 = vrot.lane.b32.xlu0 %v214, 1
    %v369 = vpop.permute.xlu0 %368
    %370 = vrot.lane.b32.xlu0 %v215, 1
    %v371 = vpop.permute.xlu0 %370
    %372 = vrot.lane.b32.xlu0 %v216, 1
    %v373 = vpop.permute.xlu0 %372
    %vm374 = vcmp.lt.s32.totalorder %v230, 1
    %v375 = vsel %vm374, %v371, %v373
    %v376 = vsel %vm374, %v369, %v371
    %v377 = vsel %vm374, %v367, %v369
    %v378 = vsel %vm374, %v373, %v367
    %s379 = scalar_lea.vmem [#allocation6], 3
    %v380 = vld [vmem:[%s379] ss:$8 sm:$0xf]
    %v382 = vlaneseq
    %v383 = vshrl.u32 %v382, 7
    %v384 = vsub.s32 0, %v383
    %v385 = vrot.slane %v380, %v384
    %v386 = vlaneseq
    %v387 = vshrl.u32 %v386, 7
    %v388 = vsub.s32 1, %v387
    %v389 = vrot.slane %v380, %v388
    %v390 = vlaneseq
    %v391 = vshrl.u32 %v390, 7
    %v392 = vsub.s32 2, %v391
    %v393 = vrot.slane %v380, %v392
    %v394 = vlaneseq
    %v395 = vshrl.u32 %v394, 7
    %v396 = vsub.s32 3, %v395
    %v397 = vrot.slane %v380, %v396
    %v402 = vmul.f32 %v378, %v385
    %v403 = vmul.f32 %v377, %v389
    %v404 = vmul.f32 %v376, %v393
    %v405 = vmul.f32 %v375, %v397
    %v410 = vrot.slane %v402, 4
    %v411 = vrot.slane %v403, 4
    %v412 = vrot.slane %v404, 4
    %v413 = vrot.slane %v405, 4
    %418 = vst [vmem:[#allocation2 + $0x20] sm:$0xf0] %v410
    %419 = vst [vmem:[#allocation2 + $0x28] sm:$0xf0] %v411
    %420 = vst [vmem:[#allocation2 + $0x30] sm:$0xf0] %v412
    %421 = vst [vmem:[#allocation2 + $0x38] sm:$0xf0] %v413
    %422 = vst [vmem:[#allocation2 + $0x40] sm:$0xf] %v213
    %423 = vst [vmem:[#allocation2 + $0x48] sm:$0xf] %v214
    %424 = vst [vmem:[#allocation2 + $0x50] sm:$0xf] %v215
    %425 = vst [vmem:[#allocation2 + $0x58] sm:$0xf] %v216
    %426 = vrot.lane.b32.xlu0 %v213, 127
    %v427 = vpop.permute.xlu0 %426
    %428 = vrot.lane.b32.xlu0 %v214, 127
    %v429 = vpop.permute.xlu0 %428
    %430 = vrot.lane.b32.xlu0 %v215, 127
    %v431 = vpop.permute.xlu0 %430
    %432 = vrot.lane.b32.xlu0 %v216, 127
    %v433 = vpop.permute.xlu0 %432
    %vm434 = vcmp.lt.s32.totalorder %v230, 127
    %v435 = vsel %vm434, %v431, %v433
    %v436 = vsel %vm434, %v429, %v431
    %v437 = vsel %vm434, %v427, %v429
    %v438 = vsel %vm434, %v433, %v427
    %s439 = scalar_lea.vmem [#allocation6], 5
    %v440 = vld [vmem:[%s439] ss:$8 sm:$0xf]
    %v442 = vlaneseq
    %v443 = vshrl.u32 %v442, 7
    %v444 = vsub.s32 0, %v443
    %v445 = vrot.slane %v440, %v444
    %v446 = vlaneseq
    %v447 = vshrl.u32 %v446, 7
    %v448 = vsub.s32 1, %v447
    %v449 = vrot.slane %v440, %v448
    %v450 = vlaneseq
    %v451 = vshrl.u32 %v450, 7
    %v452 = vsub.s32 2, %v451
    %v453 = vrot.slane %v440, %v452
    %v454 = vlaneseq
    %v455 = vshrl.u32 %v454, 7
    %v456 = vsub.s32 3, %v455
    %v457 = vrot.slane %v440, %v456
    %v462 = vmul.f32 %v437, %v445
    %v463 = vmul.f32 %v436, %v449
    %v464 = vmul.f32 %v435, %v453
    %v465 = vmul.f32 %v438, %v457
    %v470 = vrot.slane %v462, 4
    %v471 = vrot.slane %v463, 4
    %v472 = vrot.slane %v464, 4
    %v473 = vrot.slane %v465, 4
    %478 = vst [vmem:[#allocation2 + $0x40] sm:$0xf0] %v470
    %479 = vst [vmem:[#allocation2 + $0x48] sm:$0xf0] %v471
    %480 = vst [vmem:[#allocation2 + $0x50] sm:$0xf0] %v472
    %481 = vst [vmem:[#allocation2 + $0x58] sm:$0xf0] %v473
    %482 = vrot.lane.b32.xlu0 %v213, 113
    %v483 = vpop.permute.xlu0 %482
    %484 = vrot.lane.b32.xlu0 %v214, 113
    %v485 = vpop.permute.xlu0 %484
    %486 = vrot.lane.b32.xlu0 %v215, 113
    %v487 = vpop.permute.xlu0 %486
    %488 = vrot.lane.b32.xlu0 %v216, 113
    %v489 = vpop.permute.xlu0 %488
    %vm490 = vcmp.lt.s32.totalorder %v230, 113
    %v491 = vsel %vm490, %v487, %v489
    %v492 = vsel %vm490, %v485, %v487
    %v493 = vsel %vm490, %v483, %v485
    %v494 = vsel %vm490, %v489, %v483
    %s495 = scalar_lea.vmem [#allocation6], 6
    %v496 = vld [vmem:[%s495] ss:$8 sm:$0xf]
    %v498 = vlaneseq
    %v499 = vshrl.u32 %v498, 7
    %v500 = vsub.s32 0, %v499
    %v501 = vrot.slane %v496, %v500
    %v502 = vlaneseq
    %v503 = vshrl.u32 %v502, 7
    %v504 = vsub.s32 1, %v503
    %v505 = vrot.slane %v496, %v504
    %v506 = vlaneseq
    %v507 = vshrl.u32 %v506, 7
    %v508 = vsub.s32 2, %v507
    %v509 = vrot.slane %v496, %v508
    %v510 = vlaneseq
    %v511 = vshrl.u32 %v510, 7
    %v512 = vsub.s32 3, %v511
    %v513 = vrot.slane %v496, %v512
    %v518 = vmul.f32 %v493, %v501
    %v519 = vmul.f32 %v492, %v505
    %v520 = vmul.f32 %v491, %v509
    %v521 = vmul.f32 %v494, %v513
    %522 = vst [vmem:[#allocation2 + $0x60] sm:$0xf] %v518
    %523 = vst [vmem:[#allocation2 + $0x68] sm:$0xf] %v519
    %524 = vst [vmem:[#allocation2 + $0x70] sm:$0xf] %v520
    %525 = vst [vmem:[#allocation2 + $0x78] sm:$0xf] %v521
    %526 = vrot.lane.b32.xlu0 %v213, 112
    %v527 = vpop.permute.xlu0 %526
    %528 = vrot.lane.b32.xlu0 %v214, 112
    %v529 = vpop.permute.xlu0 %528
    %530 = vrot.lane.b32.xlu0 %v215, 112
    %v531 = vpop.permute.xlu0 %530
    %532 = vrot.lane.b32.xlu0 %v216, 112
    %v533 = vpop.permute.xlu0 %532
    %vm534 = vcmp.lt.s32.totalorder %v230, 112
    %v535 = vsel %vm534, %v531, %v533
    %v536 = vsel %vm534, %v529, %v531
    %v537 = vsel %vm534, %v527, %v529
    %v538 = vsel %vm534, %v533, %v527
    %s539 = scalar_lea.vmem [#allocation6], 7
    %v540 = vld [vmem:[%s539] ss:$8 sm:$0xf]
    %v542 = vlaneseq
    %v543 = vshrl.u32 %v542, 7
    %v544 = vsub.s32 0, %v543
    %v545 = vrot.slane %v540, %v544
    %v546 = vlaneseq
    %v547 = vshrl.u32 %v546, 7
    %v548 = vsub.s32 1, %v547
    %v549 = vrot.slane %v540, %v548
    %v550 = vlaneseq
    %v551 = vshrl.u32 %v550, 7
    %v552 = vsub.s32 2, %v551
    %v553 = vrot.slane %v540, %v552
    %v554 = vlaneseq
    %v555 = vshrl.u32 %v554, 7
    %v556 = vsub.s32 3, %v555
    %v557 = vrot.slane %v540, %v556
    %v562 = vmul.f32 %v537, %v545
    %v563 = vmul.f32 %v536, %v549
    %v564 = vmul.f32 %v535, %v553
    %v565 = vmul.f32 %v538, %v557
    %v570 = vrot.slane %v562, 4
    %v571 = vrot.slane %v563, 4
    %v572 = vrot.slane %v564, 4
    %v573 = vrot.slane %v565, 4
    %578 = vst [vmem:[#allocation2 + $0x60] sm:$0xf0] %v570
    %579 = vst [vmem:[#allocation2 + $0x68] sm:$0xf0] %v571
    %580 = vst [vmem:[#allocation2 + $0x70] sm:$0xf0] %v572
    %581 = vst [vmem:[#allocation2 + $0x78] sm:$0xf0] %v573
    %582 = vrot.lane.b32.xlu0 %v213, 111
    %v583 = vpop.permute.xlu0 %582
    %584 = vrot.lane.b32.xlu0 %v214, 111
    %v585 = vpop.permute.xlu0 %584
    %586 = vrot.lane.b32.xlu0 %v215, 111
    %v587 = vpop.permute.xlu0 %586
    %588 = vrot.lane.b32.xlu0 %v216, 111
    %v589 = vpop.permute.xlu0 %588
    %vm590 = vcmp.lt.s32.totalorder %v230, 111
    %v591 = vsel %vm590, %v587, %v589
    %v592 = vsel %vm590, %v585, %v587
    %v593 = vsel %vm590, %v583, %v585
    %v594 = vsel %vm590, %v589, %v583
    %s595 = scalar_lea.vmem [#allocation6], 32
    %v596 = vld [vmem:[%s595] ss:$8 sm:$0xf]
    %v598 = vlaneseq
    %v599 = vshrl.u32 %v598, 7
    %v600 = vsub.s32 0, %v599
    %v601 = vrot.slane %v596, %v600
    %v602 = vlaneseq
    %v603 = vshrl.u32 %v602, 7
    %v604 = vsub.s32 1, %v603
    %v605 = vrot.slane %v596, %v604
    %v606 = vlaneseq
    %v607 = vshrl.u32 %v606, 7
    %v608 = vsub.s32 2, %v607
    %v609 = vrot.slane %v596, %v608
    %v610 = vlaneseq
    %v611 = vshrl.u32 %v610, 7
    %v612 = vsub.s32 3, %v611
    %v613 = vrot.slane %v596, %v612
    %v618 = vmul.f32 %v593, %v601
    %v619 = vmul.f32 %v592, %v605
    %v620 = vmul.f32 %v591, %v609
    %v621 = vmul.f32 %v594, %v613
    %622 = vst [vmem:[#allocation2 + $0x80] sm:$0xf] %v618
    %623 = vst [vmem:[#allocation2 + $0x88] sm:$0xf] %v619
    %624 = vst [vmem:[#allocation2 + $0x90] sm:$0xf] %v620
    %625 = vst [vmem:[#allocation2 + $0x98] sm:$0xf] %v621
    %v626 = vld [vmem:[%s3] sm:$0xf]
    %v627 = vld [vmem:[#allocation2] sm:$0xff]
    %v628 = vld [vmem:[#allocation2 + $0x8] sm:$0xff]
    %v629 = vld [vmem:[#allocation2 + $0x10] sm:$0xff]
    %v630 = vld [vmem:[#allocation2 + $0x18] sm:$0xff]
    %v631 = vld [vmem:[#allocation2 + $0x20] sm:$0xff]
    %v632 = vld [vmem:[#allocation2 + $0x28] sm:$0xff]
    %v633 = vld [vmem:[#allocation2 + $0x30] sm:$0xff]
    %v634 = vld [vmem:[#allocation2 + $0x38] sm:$0xff]
    %v635 = vld [vmem:[#allocation2 + $0x40] sm:$0xff]
    %v636 = vld [vmem:[#allocation2 + $0x48] sm:$0xff]
    %v637 = vld [vmem:[#allocation2 + $0x50] sm:$0xff]
    %v638 = vld [vmem:[#allocation2 + $0x58] sm:$0xff]
    %v639 = vld [vmem:[#allocation2 + $0x60] sm:$0xff]
    %v640 = vld [vmem:[#allocation2 + $0x68] sm:$0xff]
    %v641 = vld [vmem:[#allocation2 + $0x70] sm:$0xff]
    %v642 = vld [vmem:[#allocation2 + $0x78] sm:$0xff]
    %v643 = vld [vmem:[#allocation2 + $0x80] sm:$0xff]
    %v644 = vld [vmem:[#allocation2 + $0x88] sm:$0xff]
    %v645 = vld [vmem:[#allocation2 + $0x90] sm:$0xff]
    %v646 = vld [vmem:[#allocation2 + $0x98] sm:$0xff]
    %v647 = vld [vmem:[%s5 + $0x4] sm:$0xf]
    %649 = vset.pattern.permute.xlu0 0
    %650 = vperm.xlu0 %649, %v647
    %v651 = vpop.permute.xlu0 %650
    %vm653 = vcmask 326656
    %v655 = vsel %vm653, %v626, 0
    %657 = vmatprep.subr.mxu0 %v628
    %658 = vmatpush1.msra.mxu0 %v627
    %659 = vmatprep.subr.mxu0 %v632
    %660 = vmatpush1.msra.mxu0 %v631
    %661 = vmatprep.subr.mxu0 %v636
    %662 = vmatpush1.msra.mxu0 %v635
    %663 = vmatprep.subr.mxu0 %v640
    %664 = vmatpush1.msra.mxu0 %v639
    %665 = vmatprep.subr.mxu0 %v644
    %666 = vmatpush1.msra.mxu0 %v643
    %667 = vmatprep.subr.mxu0 0.0
    %668 = vmatpush1.msra.mxu0 0.0
    %669 = vmatprep.subr.mxu0 0.0
    %670 = vmatpush1.msra.mxu0 0.0
    %671 = vmatprep.subr.mxu0 0.0
    %672 = vmatpush1.msra.mxu0 0.0
    %673 = vmatprep.subr.mxu0 0.0
    %674 = vmatpush1.msra.mxu0 0.0
    %675 = vmatprep.subr.mxu0 0.0
    %676 = vmatpush1.msra.mxu0 0.0
    %677 = vmatprep.subr.mxu0 0.0
    %678 = vmatpush1.msra.mxu0 0.0
    %679 = vmatprep.subr.mxu0 0.0
    %680 = vmatpush1.msra.mxu0 0.0
    %681 = vmatprep.subr.mxu0 0.0
    %682 = vmatpush1.msra.mxu0 0.0
    %683 = vmatprep.subr.mxu0 0.0
    %684 = vmatpush1.msra.mxu0 0.0
    %685 = vmatprep.subr.mxu0 0.0
    %686 = vmatpush1.msra.mxu0 0.0
    %687 = vmatprep.subr.mxu0 0.0
    %688 = vmatpush1.msra.mxu0 0.0
    %689 = vmatprep.subr.mxu0 0.0
    %690 = vmatpush1.msra.mxu0 0.0
    %691 = vmatprep.subr.mxu0 0.0
    %692 = vmatpush1.msra.mxu0 0.0
    %693 = vmatprep.subr.mxu0 0.0
    %694 = vmatpush1.msra.mxu0 0.0
    %695 = vmatprep.subr.mxu0 0.0
    %696 = vmatpush1.msra.mxu0 0.0
    %697 = vmatprep.subr.mxu0 0.0
    %698 = vmatpush1.msra.mxu0 0.0
    %699 = vmatprep.subr.mxu0 0.0
    %700 = vmatpush1.msra.mxu0 0.0
    %701 = vmatprep.subr.mxu0 0.0
    %702 = vmatpush1.msra.mxu0 0.0
    %703 = vmatprep.subr.mxu0 0.0
    %704 = vmatpush1.msra.mxu0 0.0
    %705 = vmatprep.subr.mxu0 0.0
    %706 = vmatpush1.msra.mxu0 0.0
    %707 = vmatprep.subr.mxu0 0.0
    %708 = vmatpush1.msra.mxu0 0.0
    %709 = vmatprep.subr.mxu0 0.0
    %710 = vmatpush1.msra.mxu0 0.0
    %711 = vmatprep.subr.mxu0 0.0
    %712 = vmatpush1.msra.mxu0 0.0
    %713 = vmatprep.subr.mxu0 0.0
    %714 = vmatpush1.msra.mxu0 0.0
    %715 = vmatprep.subr.mxu0 0.0
    %716 = vmatpush1.msra.mxu0 0.0
    %717 = vmatprep.subr.mxu0 0.0
    %718 = vmatpush1.msra.mxu0 0.0
    %719 = vmatprep.subr.mxu0 0.0
    %720 = vmatpush1.msra.mxu0 0.0
    %721 = vmatprep.mubr.f32.mxu0 0.0
    %722 = vmatmul.mubr.f32.gmra.mrb[0].mxu0 %v655
    %v723 = vpop.f32.mrb[0].mxu0
    %v724 = vadd.f32 %v651, %v723
    %v725 = vpop.f32.mrb[0].mxu0
    %v726 = vadd.f32 %v651, %v725
    %727 = vdwg.mxu0
    %728 = vmatprep.subr.mxu0 %v630
    %729 = vmatpush1.msra.mxu0 %v629
    %730 = vmatprep.subr.mxu0 %v634
    %731 = vmatpush1.msra.mxu0 %v633
    %732 = vmatprep.subr.mxu0 %v638
    %733 = vmatpush1.msra.mxu0 %v637
    %734 = vmatprep.subr.mxu0 %v642
    %735 = vmatpush1.msra.mxu0 %v641
    %736 = vmatprep.subr.mxu0 %v646
    %737 = vmatpush1.msra.mxu0 %v645
    %738 = vmatprep.subr.mxu0 0.0
    %739 = vmatpush1.msra.mxu0 0.0
    %740 = vmatprep.subr.mxu0 0.0
    %741 = vmatpush1.msra.mxu0 0.0
    %742 = vmatprep.subr.mxu0 0.0
    %743 = vmatpush1.msra.mxu0 0.0
    %744 = vmatprep.subr.mxu0 0.0
    %745 = vmatpush1.msra.mxu0 0.0
    %746 = vmatprep.subr.mxu0 0.0
    %747 = vmatpush1.msra.mxu0 0.0
    %748 = vmatprep.subr.mxu0 0.0
    %749 = vmatpush1.msra.mxu0 0.0
    %750 = vmatprep.subr.mxu0 0.0
    %751 = vmatpush1.msra.mxu0 0.0
    %752 = vmatprep.subr.mxu0 0.0
    %753 = vmatpush1.msra.mxu0 0.0
    %754 = vmatprep.subr.mxu0 0.0
    %755 = vmatpush1.msra.mxu0 0.0
    %756 = vmatprep.subr.mxu0 0.0
    %757 = vmatpush1.msra.mxu0 0.0
    %758 = vmatprep.subr.mxu0 0.0
    %759 = vmatpush1.msra.mxu0 0.0
    %760 = vmatprep.subr.mxu0 0.0
    %761 = vmatpush1.msra.mxu0 0.0
    %762 = vmatprep.subr.mxu0 0.0
    %763 = vmatpush1.msra.mxu0 0.0
    %764 = vmatprep.subr.mxu0 0.0
    %765 = vmatpush1.msra.mxu0 0.0
    %766 = vmatprep.subr.mxu0 0.0
    %767 = vmatpush1.msra.mxu0 0.0
    %768 = vmatprep.subr.mxu0 0.0
    %769 = vmatpush1.msra.mxu0 0.0
    %770 = vmatprep.subr.mxu0 0.0
    %771 = vmatpush1.msra.mxu0 0.0
    %772 = vmatprep.subr.mxu0 0.0
    %773 = vmatpush1.msra.mxu0 0.0
    %774 = vmatprep.subr.mxu0 0.0
    %775 = vmatpush1.msra.mxu0 0.0
    %776 = vmatprep.subr.mxu0 0.0
    %777 = vmatpush1.msra.mxu0 0.0
    %778 = vmatprep.subr.mxu0 0.0
    %779 = vmatpush1.msra.mxu0 0.0
    %780 = vmatprep.subr.mxu0 0.0
    %781 = vmatpush1.msra.mxu0 0.0
    %782 = vmatprep.subr.mxu0 0.0
    %783 = vmatpush1.msra.mxu0 0.0
    %784 = vmatprep.subr.mxu0 0.0
    %785 = vmatpush1.msra.mxu0 0.0
    %786 = vmatprep.subr.mxu0 0.0
    %787 = vmatpush1.msra.mxu0 0.0
    %788 = vmatprep.subr.mxu0 0.0
    %789 = vmatpush1.msra.mxu0 0.0
    %790 = vmatprep.subr.mxu0 0.0
    %791 = vmatpush1.msra.mxu0 0.0
    %792 = vmatprep.mubr.f32.mxu0 0.0
    %793 = vmatmul.mubr.f32.gmra.mrb[0].mxu0 %v655
    %v794 = vpop.f32.mrb[0].mxu0
    %v795 = vadd.f32 %v651, %v794
    %v796 = vpop.f32.mrb[0].mxu0
    %v797 = vadd.f32 %v651, %v796
    %798 = vdwg.mxu0
    %v799 = vmax.f32 %v724, 0.0
    %v800 = vmax.f32 %v726, 0.0
    %v801 = vmax.f32 %v795, 0.0
    %v802 = vmax.f32 %v797, 0.0
    %v803 = vld [vmem:[%s4] sm:$0xff]
    %v804 = vld [vmem:[%s4 + $0x8] sm:$0xff]
    %v805 = vld [vmem:[%s5 + $0x8] sm:$0xff]
    %v806 = vld [vmem:[%s5 + $0x10] sm:$0xff]
    %808 = vset.pattern.permute.xlu0 0
    %809 = vperm.xlu0 %808, %v805
    %v810 = vpop.permute.xlu0 %809
    %813 = vset.pattern.permute.xlu0 0
    %814 = vperm.xlu0 %813, %v806
    %v815 = vpop.permute.xlu0 %814
    %vm817 = vcmask 31744
    %v819 = vsel %vm817, %v803, 0
    %v822 = vsel %vm817, %v804, 0
    %vm824 = vcmask 1043456
    %v826 = vsel %vm824, %v799, 0
    %v829 = vsel %vm824, %v800, 0
    %v832 = vsel %vm824, %v801, 0
    %v835 = vsel %vm824, %v802, 0
    %837 = vmatprep.subr.mxu0 %v829
    %838 = vmatpush1.msra.mxu0 %v826
    %839 = vmatprep.subr.mxu0 0.0
    %840 = vmatpush1.msra.mxu0 0.0
    %841 = vmatprep.subr.mxu0 0.0
    %842 = vmatpush1.msra.mxu0 0.0
    %843 = vmatprep.subr.mxu0 0.0
    %844 = vmatpush1.msra.mxu0 0.0
    %845 = vmatprep.subr.mxu0 0.0
    %846 = vmatpush1.msra.mxu0 0.0
    %847 = vmatprep.subr.mxu0 0.0
    %848 = vmatpush1.msra.mxu0 0.0
    %849 = vmatprep.subr.mxu0 0.0
    %850 = vmatpush1.msra.mxu0 0.0
    %851 = vmatprep.subr.mxu0 0.0
    %852 = vmatpush1.msra.mxu0 0.0
    %853 = vmatprep.subr.mxu0 0.0
    %854 = vmatpush1.msra.mxu0 0.0
    %855 = vmatprep.subr.mxu0 0.0
    %856 = vmatpush1.msra.mxu0 0.0
    %857 = vmatprep.subr.mxu0 0.0
    %858 = vmatpush1.msra.mxu0 0.0
    %859 = vmatprep.subr.mxu0 0.0
    %860 = vmatpush1.msra.mxu0 0.0
    %861 = vmatprep.subr.mxu0 0.0
    %862 = vmatpush1.msra.mxu0 0.0
    %863 = vmatprep.subr.mxu0 0.0
    %864 = vmatpush1.msra.mxu0 0.0
    %865 = vmatprep.subr.mxu0 0.0
    %866 = vmatpush1.msra.mxu0 0.0
    %867 = vmatprep.subr.mxu0 0.0
    %868 = vmatpush1.msra.mxu0 0.0
    %869 = vmatprep.subr.mxu0 0.0
    %870 = vmatpush1.msra.mxu0 0.0
    %871 = vmatprep.subr.mxu0 0.0
    %872 = vmatpush1.msra.mxu0 0.0
    %873 = vmatprep.subr.mxu0 0.0
    %874 = vmatpush1.msra.mxu0 0.0
    %875 = vmatprep.subr.mxu0 0.0
    %876 = vmatpush1.msra.mxu0 0.0
    %877 = vmatprep.subr.mxu0 0.0
    %878 = vmatpush1.msra.mxu0 0.0
    %879 = vmatprep.subr.mxu0 0.0
    %880 = vmatpush1.msra.mxu0 0.0
    %881 = vmatprep.subr.mxu0 0.0
    %882 = vmatpush1.msra.mxu0 0.0
    %883 = vmatprep.subr.mxu0 0.0
    %884 = vmatpush1.msra.mxu0 0.0
    %885 = vmatprep.subr.mxu0 0.0
    %886 = vmatpush1.msra.mxu0 0.0
    %887 = vmatprep.subr.mxu0 0.0
    %888 = vmatpush1.msra.mxu0 0.0
    %889 = vmatprep.subr.mxu0 0.0
    %890 = vmatpush1.msra.mxu0 0.0
    %891 = vmatprep.subr.mxu0 0.0
    %892 = vmatpush1.msra.mxu0 0.0
    %893 = vmatprep.subr.mxu0 0.0
    %894 = vmatpush1.msra.mxu0 0.0
    %895 = vmatprep.subr.mxu0 0.0
    %896 = vmatpush1.msra.mxu0 0.0
    %897 = vmatprep.subr.mxu0 0.0
    %898 = vmatpush1.msra.mxu0 0.0
    %899 = vmatprep.subr.mxu0 0.0
    %900 = vmatpush1.msra.mxu0 0.0
    %901 = vmatprep.mubr.f32.mxu0 0.0
    %902 = vmatmul.mubr.f32.gmra.mrb[0].mxu0 %v819
    %v903 = vpop.f32.mrb[0].mxu0
    %v904 = vadd.f32 %v810, %v903
    %v905 = vpop.f32.mrb[0].mxu0
    %v906 = vadd.f32 %v810, %v905
    %907 = vmatprep.mubr.f32.mxu0 0.0
    %908 = vmatmul.mubr.f32.gmra.mrb[0].mxu0 %v822
    %v909 = vpop.f32.mrb[0].mxu0
    %v910 = vadd.f32 %v815, %v909
    %v911 = vpop.f32.mrb[0].mxu0
    %v912 = vadd.f32 %v815, %v911
    %913 = vdwg.mxu0
    %914 = vmatprep.subr.mxu0 %v835
    %915 = vmatpush1.msra.mxu0 %v832
    %916 = vmatprep.subr.mxu0 0.0
    %917 = vmatpush1.msra.mxu0 0.0
    %918 = vmatprep.subr.mxu0 0.0
    %919 = vmatpush1.msra.mxu0 0.0
    %920 = vmatprep.subr.mxu0 0.0
    %921 = vmatpush1.msra.mxu0 0.0
    %922 = vmatprep.subr.mxu0 0.0
    %923 = vmatpush1.msra.mxu0 0.0
    %924 = vmatprep.subr.mxu0 0.0
    %925 = vmatpush1.msra.mxu0 0.0
    %926 = vmatprep.subr.mxu0 0.0
    %927 = vmatpush1.msra.mxu0 0.0
    %928 = vmatprep.subr.mxu0 0.0
    %929 = vmatpush1.msra.mxu0 0.0
    %930 = vmatprep.subr.mxu0 0.0
    %931 = vmatpush1.msra.mxu0 0.0
    %932 = vmatprep.subr.mxu0 0.0
    %933 = vmatpush1.msra.mxu0 0.0
    %934 = vmatprep.subr.mxu0 0.0
    %935 = vmatpush1.msra.mxu0 0.0
    %936 = vmatprep.subr.mxu0 0.0
    %937 = vmatpush1.msra.mxu0 0.0
    %938 = vmatprep.subr.mxu0 0.0
    %939 = vmatpush1.msra.mxu0 0.0
    %940 = vmatprep.subr.mxu0 0.0
    %941 = vmatpush1.msra.mxu0 0.0
    %942 = vmatprep.subr.mxu0 0.0
    %943 = vmatpush1.msra.mxu0 0.0
    %944 = vmatprep.subr.mxu0 0.0
    %945 = vmatpush1.msra.mxu0 0.0
    %946 = vmatprep.subr.mxu0 0.0
    %947 = vmatpush1.msra.mxu0 0.0
    %948 = vmatprep.subr.mxu0 0.0
    %949 = vmatpush1.msra.mxu0 0.0
    %950 = vmatprep.subr.mxu0 0.0
    %951 = vmatpush1.msra.mxu0 0.0
    %952 = vmatprep.subr.mxu0 0.0
    %953 = vmatpush1.msra.mxu0 0.0
    %954 = vmatprep.subr.mxu0 0.0
    %955 = vmatpush1.msra.mxu0 0.0
    %956 = vmatprep.subr.mxu0 0.0
    %957 = vmatpush1.msra.mxu0 0.0
    %958 = vmatprep.subr.mxu0 0.0
    %959 = vmatpush1.msra.mxu0 0.0
    %960 = vmatprep.subr.mxu0 0.0
    %961 = vmatpush1.msra.mxu0 0.0
    %962 = vmatprep.subr.mxu0 0.0
    %963 = vmatpush1.msra.mxu0 0.0
    %964 = vmatprep.subr.mxu0 0.0
    %965 = vmatpush1.msra.mxu0 0.0
    %966 = vmatprep.subr.mxu0 0.0
    %967 = vmatpush1.msra.mxu0 0.0
    %968 = vmatprep.subr.mxu0 0.0
    %969 = vmatpush1.msra.mxu0 0.0
    %970 = vmatprep.subr.mxu0 0.0
    %971 = vmatpush1.msra.mxu0 0.0
    %972 = vmatprep.subr.mxu0 0.0
    %973 = vmatpush1.msra.mxu0 0.0
    %974 = vmatprep.subr.mxu0 0.0
    %975 = vmatpush1.msra.mxu0 0.0
    %976 = vmatprep.subr.mxu0 0.0
    %977 = vmatpush1.msra.mxu0 0.0
    %978 = vmatprep.mubr.f32.mxu0 0.0
    %979 = vmatmul.mubr.f32.gmra.mrb[0].mxu0 %v819
    %v980 = vpop.f32.mrb[0].mxu0
    %v981 = vadd.f32 %v810, %v980
    %v982 = vpop.f32.mrb[0].mxu0
    %v983 = vadd.f32 %v810, %v982
    %984 = vmatprep.mubr.f32.mxu0 0.0
    %985 = vmatmul.mubr.f32.gmra.mrb[0].mxu0 %v822
    %v986 = vpop.f32.mrb[0].mxu0
    %v987 = vadd.f32 %v815, %v986
    %v988 = vpop.f32.mrb[0].mxu0
    %v989 = vadd.f32 %v815, %v988
    %990 = vdwg.mxu0
    %v991 = vadd.f32 %v904, %v52
    %v992 = vadd.f32 %v906, %v53
    %v993 = vadd.f32 %v981, %v54
    %v994 = vadd.f32 %v983, %v55
    %v995 = vadd.f32 %v910, %v56
    %v996 = vadd.f32 %v912, %v57
    %v997 = vadd.f32 %v987, %v58
    %v998 = vadd.f32 %v989, %v59
    %v999 = vmax.f32 %v991, 0.0
    %v1000 = vmax.f32 %v992, 0.0
    %v1001 = vmax.f32 %v993, 0.0
    %v1002 = vmax.f32 %v994, 0.0
    %v1003 = vmax.f32 %v995, 0.0
    %v1004 = vmax.f32 %v996, 0.0
    %v1005 = vmax.f32 %v997, 0.0
    %v1006 = vmax.f32 %v998, 0.0
    %1007 = vst [vmem:[#allocation8] sm:$0xff] %v999
    %1008 = vst [vmem:[#allocation8 + $0x8] sm:$0xff] %v1000
    %1009 = vst [vmem:[#allocation8 + $0x10] sm:$0xff] %v1001
    %1010 = vst [vmem:[#allocation8 + $0x18] sm:$0xff] %v1002
    %1011 = vst [vmem:[#allocation8 + $0x20] sm:$0xff] %v1003
    %1012 = vst [vmem:[#allocation8 + $0x28] sm:$0xff] %v1004
    %1013 = vst [vmem:[#allocation8 + $0x30] sm:$0xff] %v1005
    %1014 = vst [vmem:[#allocation8 + $0x38] sm:$0xff] %v1006
    // Predicated region
    $region34: #{tpu_custom_call.1} parent=1 // pred_check
      _
    $region35: #{tpu_custom_call.1} parent=1 // pred_check_branch
      %1016 = sbr.rel (0) target = $region37
    $region36: #{tpu_custom_call.1} parent=1 // pred_region
      %s1018 = ssub.s32 1024, 1024
      %1019 = vsyncadd [#allocation5], %s1018
      %s1020 = sshll.u32 [#allocation8], 4
      %s1021 = int_to_ptr.vmem [resolvable:$true] %s1020
      %1026 = dma.vmem_to_hbm [thread:$0]  %s1021, 1024, %s6, [#allocation5], 512, 512, 32
    $region37: #{tpu_custom_call.1} parent=1 // pred_fallthru
      _
    // Predicated region
    $region38: #{tpu_custom_call.1} parent=1 // pred_check
      _
    $region39: #{tpu_custom_call.1} parent=1 // pred_check_branch
      %1028 = sbr.rel (0) target = $region41
    $region40: #{tpu_custom_call.1} parent=1 // pred_region
      %1029 = dma.done [#allocation5], 1024
    $region41: #{tpu_custom_call.1} parent=1 // pred_fallthru
      _
    %1030 = vsyncpa [#allocation4], 1
    %1031 = vsyncpa [#allocation7], 1
    %1032 = vsyncpa [#allocation5], 1

</llo_original>
